<compile_context>
chip_gen: v6e
topology: v6e:2x2x1
jax: 0.10.0
libtpu: 0.0.40
codegen_flags: <defaults>
</compile_context>

<pallas_src>
import functools

import jax
import jax.numpy as jnp
from jax.experimental import pallas as pl
from jax.experimental.pallas import tpu as pltpu

_LANES = 128
_VMEM_LIVE_BUDGET = 16 * 1024 * 1024   # target live bytes per grid step
_VMEM_LIMIT = 48 * 1024 * 1024         # scoped VMEM limit (< v7x 64 MiB phys)
_MAX_TILE_ROWS = 32768


def _round_up(x, m):
    return ((x + m - 1) // m) * m


def _map_dtype_for_device():
    """bf16 elementwise maps on v6e/v7x (native bf16 VPU); f32 on v5 & older."""
    try:
        kind = jax.devices()[0].device_kind.lower()
    except Exception:
        return jnp.float32
    if any(v in kind for v in ("v2", "v3", "v4", "v5")):
        return jnp.float32
    return jnp.bfloat16


def _pick_tile_rows(n_rows, live_bytes_per_row, requested):
    """Largest row-tile that fits the VMEM live-bytes budget (multiple of 32)."""
    if requested is not None:
        t = int(requested)
    else:
        t = int(_VMEM_LIVE_BUDGET // max(int(live_bytes_per_row), 1))
        t = min(t, _MAX_TILE_ROWS)
    t = max(t, 32)
    if t >= n_rows:
        return int(n_rows)           # one full block (full-dim blocks allowed)
    return (t // 32) * 32            # int8/bf16-friendly sublane multiple


# ---------------------------------------------------------------------------
# Lane-packed kernel: inputs reshaped to (rows, 128), k = 128 // C samples/row.
# ---------------------------------------------------------------------------
def _f1_packed_kernel(pred_ref, true_ref, out_ref, tpc_ref, ptc_ref, ssum_ref,
                      *, n_valid, num_classes, samples_per_row, tile_rows,
                      total_rows, map_dtype):
    i = pl.program_id(0)
    k = samples_per_row

    @pl.when(i == 0)
    def _init():
        tpc_ref[...] = jnp.zeros_like(tpc_ref)
        ptc_ref[...] = jnp.zeros_like(ptc_ref)
        ssum_ref[...] = jnp.zeros_like(ssum_ref)

    pred = pred_ref[...].astype(map_dtype)   # (tile_rows, 128), values {0,1}
    true = true_ref[...].astype(map_dtype)

    if total_rows % tile_rows != 0:
        # Ragged last tile: rows past the end of the (unpadded) input hold
        # unspecified data -> zero them before any reduction.
        row = jax.lax.broadcasted_iota(jnp.int32, (tile_rows, _LANES), 0)
        valid = row < (total_rows - i * tile_rows)
        pred = jnp.where(valid, pred, 0.0)
        true = jnp.where(valid, true, 0.0)

    # Only two maps are needed for {0,1} indicators: tp and pred + true
    # (2*tp + fp + fn == sum(pred) + sum(true)).
    tp = pred * true
    pt = pred + true

    # Lane-interleaved per-class accumulation: lane j holds class (j % C) of
    # sample-residue group (j // C).  f32 accumulate (exact for int counts).
    tpc_ref[...] += jnp.sum(tp, axis=0, keepdims=True, dtype=jnp.float32)
    ptc_ref[...] += jnp.sum(pt, axis=0, keepdims=True, dtype=jnp.float32)

    # Per-sample sums: grouped lane reduction as a block-diagonal ones matmul
    # on the otherwise-idle MXU -> (tile_rows, k).
    lane = jax.lax.broadcasted_iota(jnp.int32, (_LANES, k), 0)
    grp = jax.lax.broadcasted_iota(jnp.int32, (_LANES, k), 1)
    bd = ((lane >= grp * num_classes)
          & (lane < (grp + 1) * num_classes)).astype(map_dtype)
    tp_s = jnp.dot(tp, bd, preferred_element_type=jnp.float32)
    pt_s = jnp.dot(pt, bd, preferred_element_type=jnp.float32)
    nz_s = pt_s > 0.0
    f1_s = jnp.where(nz_s, 2.0 * tp_s / jnp.where(nz_s, pt_s, 1.0), 0.0)
    ssum_ref[...] += jnp.sum(jnp.sum(f1_s, axis=1, keepdims=True),
                             axis=0, keepdims=True)

    @pl.when(i == pl.num_programs(0) - 1)
    def _finalize():
        tp_lane = tpc_ref[...]                    # (1, 128), lane-interleaved
        pt_lane = ptc_ref[...]
        # Fold the k interleaved residue groups (cheap XLU rolls).  After the
        # fold, lane c (c < C) holds the global total for class c.
        tp_c = tp_lane
        pt_c = pt_lane
        for m in range(1, k):
            tp_c = tp_c + pltpu.roll(tp_lane, shift=m * num_classes, axis=1)
            pt_c = pt_c + pltpu.roll(pt_lane, shift=m * num_classes, axis=1)
        nz_c = pt_c > 0.0
        f1_c = jnp.where(nz_c, 2.0 * tp_c / jnp.where(nz_c, pt_c, 1.0), 0.0)
        lane_id = jax.lax.broadcasted_iota(jnp.int32, (1, _LANES), 1)
        macro = jnp.sum(jnp.where(lane_id < num_classes, f1_c, 0.0),
                        axis=1, keepdims=True) * (1.0 / num_classes)

        # micro from the raw (unfolded) accumulators: sum over all lanes.
        tp_g = jnp.sum(tp_lane, axis=1, keepdims=True)
        pt_g = jnp.sum(pt_lane, axis=1, keepdims=True)
        nz_g = pt_g > 0.0
        micro = jnp.where(nz_g, 2.0 * tp_g / jnp.where(nz_g, pt_g, 1.0), 0.0)

        samples = ssum_ref[...] * (1.0 / n_valid)

        out_ref[...] = jnp.where(lane_id == 0, macro,
                       jnp.where(lane_id == 1, micro,
                       jnp.where(lane_id == 2, samples, 0.0)))


# ---------------------------------------------------------------------------
# Generic row-major fallback: (N, C) blocks, used when lane packing is not a
# free reshape (C does not divide 128, or N*C not a multiple of 128).
# ---------------------------------------------------------------------------
def _f1_rowmajor_kernel(pred_ref, true_ref, out_ref, tpc_ref, ptc_ref,
                        ssum_ref, *, n_valid, num_classes, tile_n, map_dtype):
    i = pl.program_id(0)

    @pl.when(i == 0)
    def _init():
        tpc_ref[...] = jnp.zeros_like(tpc_ref)
        ptc_ref[...] = jnp.zeros_like(ptc_ref)
        ssum_ref[...] = jnp.zeros_like(ssum_ref)

    pred = pred_ref[...].astype(map_dtype)        # (tile_n, C), values {0,1}
    true = true_ref[...].astype(map_dtype)

    if n_valid % tile_n != 0:
        row = jax.lax.broadcasted_iota(jnp.int32, (tile_n, num_classes), 0)
        valid = row < (n_valid - i * tile_n)
        pred = jnp.where(valid, pred, 0.0)
        true = jnp.where(valid, true, 0.0)

    tp = pred * true
    pt = pred + true

    # Per-class accumulation (macro / micro); f32 accumulate.
    tpc_ref[...] += jnp.sum(tp, axis=0, keepdims=True, dtype=jnp.float32)
    ptc_ref[...] += jnp.sum(pt, axis=0, keepdims=True, dtype=jnp.float32)

    # Per-sample F1 contribution (samples average); exact divide.
    tp_s = jnp.sum(tp, axis=1, keepdims=True, dtype=jnp.float32)
    pt_s = jnp.sum(pt, axis=1, keepdims=True, dtype=jnp.float32)
    nz_s = pt_s > 0.0
    f1_s = jnp.where(nz_s, 2.0 * tp_s / jnp.where(nz_s, pt_s, 1.0), 0.0)
    ssum_ref[...] += jnp.sum(f1_s, axis=0, keepdims=True)

    @pl.when(i == pl.num_programs(0) - 1)
    def _finalize():
        tp_c = tpc_ref[...]                       # (1, C)
        pt_c = ptc_ref[...]
        nz_c = pt_c > 0.0
        f1_c = jnp.where(nz_c, 2.0 * tp_c / jnp.where(nz_c, pt_c, 1.0), 0.0)
        macro = jnp.sum(f1_c, axis=1, keepdims=True) * (1.0 / num_classes)

        tp_g = jnp.sum(tp_c, axis=1, keepdims=True)
        pt_g = jnp.sum(pt_c, axis=1, keepdims=True)
        nz_g = pt_g > 0.0
        micro = jnp.where(nz_g, 2.0 * tp_g / jnp.where(nz_g, pt_g, 1.0), 0.0)

        samples = ssum_ref[...] * (1.0 / n_valid)

        lane_id = jax.lax.broadcasted_iota(jnp.int32, (1, _LANES), 1)
        out_ref[...] = jnp.where(lane_id == 0, macro,
                       jnp.where(lane_id == 1, micro,
                       jnp.where(lane_id == 2, samples, 0.0)))


def f1_score_pallas(predict_labels, true_labels, *, tile_rows=None,
                    map_dtype=None):
    """sklearn-style (macro, micro, samples) F1 for (N, C) binary indicator
    matrices with values in {0, 1}.  Inputs are consumed in their original
    (preferably narrow, e.g. bool/int8) dtype, with no padded HBM copy.
    Returns (macro_f1, micro_f1, samples_f1) as f32 scalars."""
    pred, true = predict_labels, true_labels
    assert pred.shape == true.shape and pred.ndim == 2
    n, c = pred.shape
    if map_dtype is None:
        map_dtype = _map_dtype_for_device()
    in_bytes = jnp.dtype(pred.dtype).itemsize
    map_bytes = jnp.dtype(map_dtype).itemsize
    # live VMEM per row ~= 2 inputs x 2 pipeline buffers (in_bytes) plus the
    # pred/true/tp/pt map temporaries (map_bytes).
    live_per_col = 4 * in_bytes + 4 * map_bytes

    packed = (c <= _LANES) and (_LANES % c == 0) \
        and ((n * c) % _LANES == 0) and (n * c >= _LANES)

    if packed:
        k = _LANES // c
        rows = (n * c) // _LANES
        # Free, contiguous reshape: row m holds samples m*k .. m*k + k - 1,
        # each occupying C consecutive lanes -> all 128 lanes live.
        pred_in = jnp.reshape(pred, (rows, _LANES))
        true_in = jnp.reshape(true, (rows, _LANES))
        tr = _pick_tile_rows(rows, _LANES * live_per_col, tile_rows)
        grid = (pl.cdiv(rows, tr),)
        kernel = functools.partial(
            _f1_packed_kernel, n_valid=n, num_classes=c, samples_per_row=k,
            tile_rows=tr, total_rows=rows, map_dtype=map_dtype)
        in_specs = [pl.BlockSpec((tr, _LANES), lambda i: (i, 0)),
                    pl.BlockSpec((tr, _LANES), lambda i: (i, 0))]
        scratch = [pltpu.VMEM((1, _LANES), jnp.float32),
                   pltpu.VMEM((1, _LANES), jnp.float32),
                   pltpu.VMEM((1, 1), jnp.float32)]
    else:
        # Generic row-major fallback.
        pred_in, true_in = pred, true
        rows = n
        tr = _pick_tile_rows(rows, c * live_per_col, tile_rows)
        grid = (pl.cdiv(rows, tr),)
        kernel = functools.partial(
            _f1_rowmajor_kernel, n_valid=n, num_classes=c, tile_n=tr,
            map_dtype=map_dtype)
        in_specs = [pl.BlockSpec((tr, c), lambda i: (i, 0)),
                    pl.BlockSpec((tr, c), lambda i: (i, 0))]
        scratch = [pltpu.VMEM((1, c), jnp.float32),
                   pltpu.VMEM((1, c), jnp.float32),
                   pltpu.VMEM((1, 1), jnp.float32)]

    out = pl.pallas_call(
        kernel,
        out_shape=jax.ShapeDtypeStruct((1, _LANES), jnp.float32),
        grid_spec=pltpu.PrefetchScalarGridSpec(
            num_scalar_prefetch=0,
            grid=grid,
            in_specs=in_specs,
            out_specs=pl.BlockSpec((1, _LANES), lambda i: (0, 0)),
            scratch_shapes=scratch,
        ),
        compiler_params=pltpu.CompilerParams(
            dimension_semantics=("arbitrary",),
            vmem_limit_bytes=_VMEM_LIMIT,
        ),
    )(pred_in, true_in)

    return out[0, 0], out[0, 1], out[0, 2]


def _f1_reference(pred, true):
    """Pure-JAX reference mirroring sklearn f1_score semantics."""
    pred = pred.astype(jnp.float32)
    true = true.astype(jnp.float32)
    tp = pred * true
    fp = pred * (1.0 - true)
    fn = (1.0 - pred) * true

    def safe(tp_, fp_, fn_):
        d = 2.0 * tp_ + fp_ + fn_
        return jnp.where(d > 0, 2.0 * tp_ / jnp.where(d > 0, d, 1.0), 0.0)

    macro = jnp.mean(safe(tp.sum(0), fp.sum(0), fn.sum(0)))
    micro = safe(tp.sum(), fp.sum(), fn.sum())
    samples = jnp.mean(safe(tp.sum(1), fp.sum(1), fn.sum(1)))
    return macro, micro, samples


if __name__ == "__main__":
    key = jax.random.PRNGKey(0)
    k1, k2, k3, k4 = jax.random.split(key, 4)

    # Multilabel indicator matrices (values in {0,1}), narrow int8 dtype.
    N, C = 288, 32                      # 128 % 32 == 0 -> lane-packed path
    pred = jax.random.bernoulli(k1, p=0.4, shape=(N, C)).astype(jnp.int8)
    true = jax.random.bernoulli(k2, p=0.4, shape=(N, C)).astype(jnp.int8)
    ref = _f1_reference(pred, true)

    # (a) packed path, auto tile (single grid step).
    out_a = f1_score_pallas(pred, true)
    # (b) packed path, small tile -> 3 grid steps + masked ragged last tile.
    out_b = f1_score_pallas(pred, true, tile_rows=32)

    # (c) generic row-major fallback (48 does not divide 128), 3 grid steps
    #     with a masked ragged last tile.
    N2, C2 = 80, 48
    pred2 = jax.random.bernoulli(k3, p=0.3, shape=(N2, C2)).astype(jnp.int8)
    true2 = jax.random.bernoulli(k4, p=0.5, shape=(N2, C2)).astype(jnp.int8)
    ref2 = _f1_reference(pred2, true2)
    out_c = f1_score_pallas(pred2, true2, tile_rows=32)

    jax.block_until_ready((out_a, out_b, out_c))

    for got, want in ((out_a, ref), (out_b, ref), (out_c, ref2)):
        for g, w, tol in zip(got, want, (1e-5, 1e-5, 1e-4)):
            assert abs(float(g) - float(w)) < tol, (float(g), float(w), tol)

    print("KERNEL_OK")
</pallas_src>

<mosaic_0001>
module attributes {stable_mosaic.version = 11 : i64} {
  func.func @_f1_packed_kernel(%arg0: i32, %arg1: memref<72x128xi8, #tpu.memory_space<vmem>>, %arg2: memref<72x128xi8, #tpu.memory_space<vmem>>, %arg3: memref<1x128xf32, #tpu.memory_space<vmem>>, %arg4: memref<1x128xf32, #tpu.memory_space<vmem>>, %arg5: memref<1x128xf32, #tpu.memory_space<vmem>>, %arg6: memref<1x1xf32, #tpu.memory_space<vmem>>) attributes {dimension_semantics = [#tpu.dimension_semantics<arbitrary>], iteration_bounds = array<i64: 1>, scalar_prefetch = 0 : i64, scratch_operands = 3 : i64, tpu.core_type = #tpu.core_type<tc>, window_params = [{transform_indices = @transform_0, window_bounds = array<i64: 72, 128>}, {transform_indices = @transform_1, window_bounds = array<i64: 72, 128>}, {pipeline_mode = #tpu.pipeline_mode<synchronous>, transform_indices = @transform_2, window_bounds = array<i64: 1, 128>}]} {
    %c0_i32 = arith.constant 0 : i32
    %0 = arith.cmpi eq, %arg0, %c0_i32 : i32
    %1 = arith.extui %0 : i1 to i32
    %c0_i32_0 = arith.constant 0 : i32
    %2 = arith.cmpi ne, %1, %c0_i32_0 : i32
    scf.if %2 {
      %cst_28 = arith.constant 0.000000e+00 : f32
      %56 = vector.broadcast %cst_28 : f32 to vector<1x128xf32>
      %c0_29 = arith.constant 0 : index
      %c0_30 = arith.constant 0 : index
      %57 = vector.load %arg4[%c0_29, %c0_30] : memref<1x128xf32, #tpu.memory_space<vmem>>, vector<1x128xf32>
      tpu.vector_store %arg4[%c0_29, %c0_30], %56 {strides = array<i32>} : memref<1x128xf32, #tpu.memory_space<vmem>>, vector<1x128xf32>,
      %cst_31 = arith.constant 0.000000e+00 : f32
      %58 = vector.broadcast %cst_31 : f32 to vector<1x128xf32>
      %c0_32 = arith.constant 0 : index
      %c0_33 = arith.constant 0 : index
      %59 = vector.load %arg5[%c0_32, %c0_33] : memref<1x128xf32, #tpu.memory_space<vmem>>, vector<1x128xf32>
      tpu.vector_store %arg5[%c0_32, %c0_33], %58 {strides = array<i32>} : memref<1x128xf32, #tpu.memory_space<vmem>>, vector<1x128xf32>,
      %cst_34 = arith.constant 0.000000e+00 : f32
      %60 = vector.broadcast %cst_34 : f32 to vector<1x1xf32>
      %c0_35 = arith.constant 0 : index
      %c0_36 = arith.constant 0 : index
      %61 = vector.load %arg6[%c0_35, %c0_36] : memref<1x1xf32, #tpu.memory_space<vmem>>, vector<1x1xf32>
      tpu.vector_store %arg6[%c0_35, %c0_36], %60 {strides = array<i32>} : memref<1x1xf32, #tpu.memory_space<vmem>>, vector<1x1xf32>,
    } else {
    }
    %c0 = arith.constant 0 : index
    %c0_1 = arith.constant 0 : index
    %3 = vector.load %arg1[%c0, %c0_1] : memref<72x128xi8, #tpu.memory_space<vmem>>, vector<72x128xi8>
    %4 = arith.sitofp %3 : vector<72x128xi8> to vector<72x128xbf16>
    %c0_2 = arith.constant 0 : index
    %c0_3 = arith.constant 0 : index
    %5 = vector.load %arg2[%c0_2, %c0_3] : memref<72x128xi8, #tpu.memory_space<vmem>>, vector<72x128xi8>
    %6 = arith.sitofp %5 : vector<72x128xi8> to vector<72x128xbf16>
    %7 = arith.mulf %4, %6 : vector<72x128xbf16>
    %8 = arith.addf %4, %6 : vector<72x128xbf16>
    %c0_4 = arith.constant 0 : index
    %c0_5 = arith.constant 0 : index
    %9 = vector.load %arg4[%c0_4, %c0_5] : memref<1x128xf32, #tpu.memory_space<vmem>>, vector<1x128xf32>
    %10 = arith.extf %7 : vector<72x128xbf16> to vector<72x128xf32>
    %cst = arith.constant dense<0.000000e+00> : vector<128xf32>
    %11 = vector.multi_reduction <add>, %10, %cst [0] : vector<72x128xf32> to vector<128xf32>
    %12 = vector.shape_cast %11 : vector<128xf32> to vector<1x128xf32>
    %13 = arith.addf %9, %12 : vector<1x128xf32>
    %c0_6 = arith.constant 0 : index
    %c0_7 = arith.constant 0 : index
    %14 = vector.load %arg4[%c0_6, %c0_7] : memref<1x128xf32, #tpu.memory_space<vmem>>, vector<1x128xf32>
    tpu.vector_store %arg4[%c0_6, %c0_7], %13 {strides = array<i32>} : memref<1x128xf32, #tpu.memory_space<vmem>>, vector<1x128xf32>,
    %c0_8 = arith.constant 0 : index
    %c0_9 = arith.constant 0 : index
    %15 = vector.load %arg5[%c0_8, %c0_9] : memref<1x128xf32, #tpu.memory_space<vmem>>, vector<1x128xf32>
    %16 = arith.extf %8 : vector<72x128xbf16> to vector<72x128xf32>
    %cst_10 = arith.constant dense<0.000000e+00> : vector<128xf32>
    %17 = vector.multi_reduction <add>, %16, %cst_10 [0] : vector<72x128xf32> to vector<128xf32>
    %18 = vector.shape_cast %17 : vector<128xf32> to vector<1x128xf32>
    %19 = arith.addf %15, %18 : vector<1x128xf32>
    %c0_11 = arith.constant 0 : index
    %c0_12 = arith.constant 0 : index
    %20 = vector.load %arg5[%c0_11, %c0_12] : memref<1x128xf32, #tpu.memory_space<vmem>>, vector<1x128xf32>
    tpu.vector_store %arg5[%c0_11, %c0_12], %19 {strides = array<i32>} : memref<1x128xf32, #tpu.memory_space<vmem>>, vector<1x128xf32>,
    %21 = tpu.iota {dimensions = array<i32: 0>} : vector<128x4xi32>
    %22 = tpu.iota {dimensions = array<i32: 1>} : vector<128x4xi32>
    %c32_i32 = arith.constant 32 : i32
    %23 = vector.broadcast %c32_i32 : i32 to vector<128x4xi32>
    %24 = arith.muli %22, %23 : vector<128x4xi32>
    %25 = arith.cmpi sge, %21, %24 : vector<128x4xi32>
    %c1_i32 = arith.constant 1 : i32
    %26 = vector.broadcast %c1_i32 : i32 to vector<128x4xi32>
    %27 = arith.addi %22, %26 : vector<128x4xi32>
    %c32_i32_13 = arith.constant 32 : i32
    %28 = vector.broadcast %c32_i32_13 : i32 to vector<128x4xi32>
    %29 = arith.muli %27, %28 : vector<128x4xi32>
    %30 = arith.cmpi slt, %21, %29 : vector<128x4xi32>
    %31 = arith.andi %25, %30 : vector<128x4xi1>
    %32 = arith.extui %31 : vector<128x4xi1> to vector<128x4xi32>
    %33 = arith.sitofp %32 : vector<128x4xi32> to vector<128x4xf32>
    %34 = arith.truncf %33 : vector<128x4xf32> to vector<128x4xbf16>
    %cst_14 = arith.constant dense<0.000000e+00> : vector<72x4xf32>
    %35 = tpu.matmul %7, %34, %cst_14 {dimension_numbers = #tpu.dot_dimension_numbers<[1], [0], [0], [1], [0, 0, 1, 1], [], []>} : vector<72x128xbf16>, vector<128x4xbf16>, vector<72x4xf32> -> vector<72x4xf32>
    %cst_15 = arith.constant dense<0.000000e+00> : vector<72x4xf32>
    %36 = tpu.matmul %8, %34, %cst_15 {dimension_numbers = #tpu.dot_dimension_numbers<[1], [0], [0], [1], [0, 0, 1, 1], [], []>} : vector<72x128xbf16>, vector<128x4xbf16>, vector<72x4xf32> -> vector<72x4xf32>
    %cst_16 = arith.constant 0.000000e+00 : f32
    %37 = vector.broadcast %cst_16 : f32 to vector<72x4xf32>
    %38 = arith.cmpf ogt, %36, %37 : vector<72x4xf32>
    %cst_17 = arith.constant 2.000000e+00 : f32
    %39 = vector.broadcast %cst_17 : f32 to vector<72x4xf32>
    %40 = arith.mulf %39, %35 : vector<72x4xf32>
    %cst_18 = arith.constant 1.000000e+00 : f32
    %41 = vector.broadcast %cst_18 : f32 to vector<72x4xf32>
    %42 = arith.select %38, %36, %41 : vector<72x4xi1>, vector<72x4xf32>
    %43 = arith.divf %40, %42 : vector<72x4xf32>
    %cst_19 = arith.constant 0.000000e+00 : f32
    %44 = vector.broadcast %cst_19 : f32 to vector<72x4xf32>
    %45 = arith.select %38, %43, %44 : vector<72x4xi1>, vector<72x4xf32>
    %c0_20 = arith.constant 0 : index
    %c0_21 = arith.constant 0 : index
    %46 = vector.load %arg6[%c0_20, %c0_21] : memref<1x1xf32, #tpu.memory_space<vmem>>, vector<1x1xf32>
    %cst_22 = arith.constant dense<0.000000e+00> : vector<72xf32>
    %47 = vector.multi_reduction <add>, %45, %cst_22 [1] : vector<72x4xf32> to vector<72xf32>
    %48 = vector.shape_cast %47 : vector<72xf32> to vector<72x1xf32>
    %cst_23 = arith.constant dense<0.000000e+00> : vector<1xf32>
    %49 = vector.multi_reduction <add>, %48, %cst_23 [0] : vector<72x1xf32> to vector<1xf32>
    %50 = vector.shape_cast %49 : vector<1xf32> to vector<1x1xf32>
    %51 = arith.addf %46, %50 : vector<1x1xf32>
    %c0_24 = arith.constant 0 : index
    %c0_25 = arith.constant 0 : index
    %52 = vector.load %arg6[%c0_24, %c0_25] : memref<1x1xf32, #tpu.memory_space<vmem>>, vector<1x1xf32>
    tpu.vector_store %arg6[%c0_24, %c0_25], %51 {strides = array<i32>} : memref<1x1xf32, #tpu.memory_space<vmem>>, vector<1x1xf32>,
    %c0_i32_26 = arith.constant 0 : i32
    %53 = arith.cmpi eq, %arg0, %c0_i32_26 : i32
    %54 = arith.extui %53 : i1 to i32
    %c0_i32_27 = arith.constant 0 : i32
    %55 = arith.cmpi ne, %54, %c0_i32_27 : i32
    scf.if %55 {
      %c0_28 = arith.constant 0 : index
      %c0_29 = arith.constant 0 : index
      %56 = vector.load %arg4[%c0_28, %c0_29] : memref<1x128xf32, #tpu.memory_space<vmem>>, vector<1x128xf32>
      %c0_30 = arith.constant 0 : index
      %c0_31 = arith.constant 0 : index
      %57 = vector.load %arg5[%c0_30, %c0_31] : memref<1x128xf32, #tpu.memory_space<vmem>>, vector<1x128xf32>
      %c32_i32_32 = arith.constant 32 : i32
      %58 = tpu.dynamic_rotate %56 by %c32_i32_32 dim 1 : vector<1x128xf32>, i32 -> vector<1x128xf32>
      %59 = arith.addf %56, %58 : vector<1x128xf32>
      %c32_i32_33 = arith.constant 32 : i32
      %60 = tpu.dynamic_rotate %57 by %c32_i32_33 dim 1 : vector<1x128xf32>, i32 -> vector<1x128xf32>
      %61 = arith.addf %57, %60 : vector<1x128xf32>
      %c64_i32 = arith.constant 64 : i32
      %62 = tpu.dynamic_rotate %56 by %c64_i32 dim 1 : vector<1x128xf32>, i32 -> vector<1x128xf32>
      %63 = arith.addf %59, %62 : vector<1x128xf32>
      %c64_i32_34 = arith.constant 64 : i32
      %64 = tpu.dynamic_rotate %57 by %c64_i32_34 dim 1 : vector<1x128xf32>, i32 -> vector<1x128xf32>
      %65 = arith.addf %61, %64 : vector<1x128xf32>
      %c96_i32 = arith.constant 96 : i32
      %66 = tpu.dynamic_rotate %56 by %c96_i32 dim 1 : vector<1x128xf32>, i32 -> vector<1x128xf32>
      %67 = arith.addf %63, %66 : vector<1x128xf32>
      %c96_i32_35 = arith.constant 96 : i32
      %68 = tpu.dynamic_rotate %57 by %c96_i32_35 dim 1 : vector<1x128xf32>, i32 -> vector<1x128xf32>
      %69 = arith.addf %65, %68 : vector<1x128xf32>
      %cst_36 = arith.constant 0.000000e+00 : f32
      %70 = vector.broadcast %cst_36 : f32 to vector<1x128xf32>
      %71 = arith.cmpf ogt, %69, %70 : vector<1x128xf32>
      %cst_37 = arith.constant 2.000000e+00 : f32
      %72 = vector.broadcast %cst_37 : f32 to vector<1x128xf32>
      %73 = arith.mulf %72, %67 : vector<1x128xf32>
      %cst_38 = arith.constant 1.000000e+00 : f32
      %74 = vector.broadcast %cst_38 : f32 to vector<1x128xf32>
      %75 = arith.select %71, %69, %74 : vector<1x128xi1>, vector<1x128xf32>
      %76 = arith.divf %73, %75 : vector<1x128xf32>
      %cst_39 = arith.constant 0.000000e+00 : f32
      %77 = vector.broadcast %cst_39 : f32 to vector<1x128xf32>
      %78 = arith.select %71, %76, %77 : vector<1x128xi1>, vector<1x128xf32>
      %79 = tpu.iota {dimensions = array<i32: 1>} : vector<1x128xi32>
      %c32_i32_40 = arith.constant 32 : i32
      %80 = vector.broadcast %c32_i32_40 : i32 to vector<1x128xi32>
      %81 = arith.cmpi slt, %79, %80 : vector<1x128xi32>
      %cst_41 = arith.constant 0.000000e+00 : f32
      %82 = vector.broadcast %cst_41 : f32 to vector<1x128xf32>
      %83 = arith.select %81, %78, %82 : vector<1x128xi1>, vector<1x128xf32>
      %cst_42 = arith.constant dense<0.000000e+00> : vector<1xf32>
      %84 = vector.multi_reduction <add>, %83, %cst_42 [1] : vector<1x128xf32> to vector<1xf32>
      %85 = vector.shape_cast %84 : vector<1xf32> to vector<1x1xf32>
      %cst_43 = arith.constant 3.125000e-02 : f32
      %86 = vector.broadcast %cst_43 : f32 to vector<1x1xf32>
      %87 = arith.mulf %85, %86 : vector<1x1xf32>
      %cst_44 = arith.constant dense<0.000000e+00> : vector<1xf32>
      %88 = vector.multi_reduction <add>, %56, %cst_44 [1] : vector<1x128xf32> to vector<1xf32>
      %89 = vector.shape_cast %88 : vector<1xf32> to vector<1x1xf32>
      %cst_45 = arith.constant dense<0.000000e+00> : vector<1xf32>
      %90 = vector.multi_reduction <add>, %57, %cst_45 [1] : vector<1x128xf32> to vector<1xf32>
      %91 = vector.shape_cast %90 : vector<1xf32> to vector<1x1xf32>
      %cst_46 = arith.constant 0.000000e+00 : f32
      %92 = vector.broadcast %cst_46 : f32 to vector<1x1xf32>
      %93 = arith.cmpf ogt, %91, %92 : vector<1x1xf32>
      %cst_47 = arith.constant 2.000000e+00 : f32
      %94 = vector.broadcast %cst_47 : f32 to vector<1x1xf32>
      %95 = arith.mulf %94, %89 : vector<1x1xf32>
      %cst_48 = arith.constant 1.000000e+00 : f32
      %96 = vector.broadcast %cst_48 : f32 to vector<1x1xf32>
      %97 = arith.select %93, %91, %96 : vector<1x1xi1>, vector<1x1xf32>
      %98 = arith.divf %95, %97 : vector<1x1xf32>
      %cst_49 = arith.constant 0.000000e+00 : f32
      %99 = vector.broadcast %cst_49 : f32 to vector<1x1xf32>
      %100 = arith.select %93, %98, %99 : vector<1x1xi1>, vector<1x1xf32>
      %c0_50 = arith.constant 0 : index
      %c0_51 = arith.constant 0 : index
      %101 = vector.load %arg6[%c0_50, %c0_51] : memref<1x1xf32, #tpu.memory_space<vmem>>, vector<1x1xf32>
      %cst_52 = arith.constant 0.00347222225 : f32
      %102 = vector.broadcast %cst_52 : f32 to vector<1x1xf32>
      %103 = arith.mulf %101, %102 : vector<1x1xf32>
      %c0_i32_53 = arith.constant 0 : i32
      %104 = vector.broadcast %c0_i32_53 : i32 to vector<1x128xi32>
      %105 = arith.cmpi eq, %79, %104 : vector<1x128xi32>
      %c1_i32_54 = arith.constant 1 : i32
      %106 = vector.broadcast %c1_i32_54 : i32 to vector<1x128xi32>
      %107 = arith.cmpi eq, %79, %106 : vector<1x128xi32>
      %c2_i32 = arith.constant 2 : i32
      %108 = vector.broadcast %c2_i32 : i32 to vector<1x128xi32>
      %109 = arith.cmpi eq, %79, %108 : vector<1x128xi32>
      %cst_55 = arith.constant 0.000000e+00 : f32
      %110 = vector.shape_cast %103 : vector<1x1xf32> to vector<1x1xf32>
      %111 = vector.broadcast %110 : vector<1x1xf32> to vector<1x128xf32>
      %112 = vector.broadcast %cst_55 : f32 to vector<1x128xf32>
      %113 = arith.select %109, %111, %112 : vector<1x128xi1>, vector<1x128xf32>
      %114 = vector.shape_cast %100 : vector<1x1xf32> to vector<1x1xf32>
      %115 = vector.broadcast %114 : vector<1x1xf32> to vector<1x128xf32>
      %116 = arith.select %107, %115, %113 : vector<1x128xi1>, vector<1x128xf32>
      %117 = vector.shape_cast %87 : vector<1x1xf32> to vector<1x1xf32>
      %118 = vector.broadcast %117 : vector<1x1xf32> to vector<1x128xf32>
      %119 = arith.select %105, %118, %116 : vector<1x128xi1>, vector<1x128xf32>
      %c0_56 = arith.constant 0 : index
      %c0_57 = arith.constant 0 : index
      %120 = vector.load %arg3[%c0_56, %c0_57] : memref<1x128xf32, #tpu.memory_space<vmem>>, vector<1x128xf32>
      tpu.vector_store %arg3[%c0_56, %c0_57], %119 {strides = array<i32>} : memref<1x128xf32, #tpu.memory_space<vmem>>, vector<1x128xf32>,
    } else {
    }
    return
  }
  func.func @transform_0(%arg0: i32) -> (i32, i32) {
    %c0_i32 = arith.constant 0 : i32
    %c0_i32_0 = arith.constant 0 : i32
    return %arg0, %c0_i32 : i32, i32
  }
  func.func @transform_1(%arg0: i32) -> (i32, i32) {
    %c0_i32 = arith.constant 0 : i32
    %c0_i32_0 = arith.constant 0 : i32
    return %arg0, %c0_i32 : i32, i32
  }
  func.func @transform_2(%arg0: i32) -> (i32, i32) {
    %c0_i32 = arith.constant 0 : i32
    %c0_i32_0 = arith.constant 0 : i32
    %c0_i32_1 = arith.constant 0 : i32
    return %c0_i32, %c0_i32_0 : i32, i32
  }
}

</mosaic_0001>

<llo_original>
// kernel: tpu_custom_call.1
$region0: #{tpu_custom_call.1}
  #allocation0 [shape = 'u32[]', space=smem, size = 0x4, offset = 0x4, fixed_abs, tag = 'smem constant byte address 0x4 - core index']
  #allocation1 [shape = 'u32[144,128]{1,0:T(1,128)}', space=vmem, size = 0x12000, scoped, tag = 'internal scratch']
  #allocation2 [shape = 'f32[1,128]{1,0:T(1,128)}', space=vmem, size = 0x200, scoped, tag = 'scratch operand']
  #allocation3 [shape = 'f32[1,128]{1,0:T(1,128)}', space=vmem, size = 0x200, scoped, tag = 'scratch operand']
  #allocation4 [shape = 'f32[1,1]{1,0:T(1,128)}', space=vmem, size = 0x200, scoped, tag = 'scratch operand']
  %s0 = inlined_call_operand.hbm [shape: s8[72,128], index: 0, kind: input, shape index: {}]
  %s1 = inlined_call_operand.hbm [shape: s8[72,128], index: 1, kind: input, shape index: {}]
  %s2 = inlined_call_operand.hbm [shape: f32[1,128], index: 2, kind: output, shape index: {}]
  %s3 = sld [smem:[#allocation0]]
  $region34: #{tpu_custom_call.1} parent=0
    _
  %s5 = ssub.s32 1, %s3
  %s6 = scalar_select 0, %s5, %s3
  $region1: #{tpu_custom_call.1} parent=0
    #allocation5 [shape = 'u8[9216]{0}', space=vmem, size = 0x2400, scoped, tag = 'input window, operand 0, single buffered']
    #allocation6 [shape = 's32[1]{0}', space=sflag, size = 0x4, scoped, tag = 'scoped memory for tpu_custom_call.1']
    #allocation7 [shape = 's32[1]{0}', space=sflag, size = 0x4, scoped, tag = 'scoped memory for tpu_custom_call.1']
    #allocation8 [shape = 'u8[9216]{0}', space=vmem, size = 0x2400, scoped, tag = 'input window, operand 1, single buffered']
    #allocation9 [shape = 's32[1]{0}', space=sflag, size = 0x4, scoped, tag = 'scoped memory for tpu_custom_call.1']
    #allocation10 [shape = 'u8[512]{0}', space=vmem, size = 0x400, scoped, tag = 'output window, operand 0, single buffered']
    %7 = vsyncpa [#allocation6], 0
    %8 = vsyncpa [#allocation9], 0
    %9 = vsyncpa [#allocation7], 0
    // Predicated region
    $region2: #{tpu_custom_call.1} parent=1 // pred_check
      _
    $region3: #{tpu_custom_call.1} parent=1 // pred_check_branch
      %11 = sbr.rel (0) target = $region5
    $region4: #{tpu_custom_call.1} parent=1 // pred_region
      %s13 = ssub.s32 288, 288
      %14 = vsyncadd [#allocation6], %s13
      %s15 = sshll.u32 [#allocation5], 4
      %s16 = int_to_ptr.vmem [resolvable:$true] %s15
      %21 = dma.hbm_to_vmem [thread:$0]  %s0, 288, %s16, [#allocation6], 32, 32, 2
    $region5: #{tpu_custom_call.1} parent=1 // pred_fallthru
      _
    // Predicated region
    $region6: #{tpu_custom_call.1} parent=1 // pred_check
      _
    $region7: #{tpu_custom_call.1} parent=1 // pred_check_branch
      %23 = sbr.rel (0) target = $region9
    $region8: #{tpu_custom_call.1} parent=1 // pred_region
      %s25 = ssub.s32 288, 288
      %26 = vsyncadd [#allocation9], %s25
      %s27 = sshll.u32 [#allocation8], 4
      %s28 = int_to_ptr.vmem [resolvable:$true] %s27
      %33 = dma.hbm_to_vmem [thread:$0]  %s1, 288, %s28, [#allocation9], 32, 32, 2
    $region9: #{tpu_custom_call.1} parent=1 // pred_fallthru
      _
    // Predicated region
    $region10: #{tpu_custom_call.1} parent=1 // pred_check
      _
    $region11: #{tpu_custom_call.1} parent=1 // pred_check_branch
      %35 = sbr.rel (0) target = $region13
    $region12: #{tpu_custom_call.1} parent=1 // pred_region
      %36 = dma.done [#allocation6], 288
    $region13: #{tpu_custom_call.1} parent=1 // pred_fallthru
      _
    // Predicated region
    $region14: #{tpu_custom_call.1} parent=1 // pred_check
      _
    $region15: #{tpu_custom_call.1} parent=1 // pred_check_branch
      %38 = sbr.rel (0) target = $region17
    $region16: #{tpu_custom_call.1} parent=1 // pred_region
      %39 = dma.done [#allocation9], 288
    $region17: #{tpu_custom_call.1} parent=1 // pred_fallthru
      _
    %p41 = scmp.eq.s32.totalorder 0, 0
    // Predicated region
    $region18: #{tpu_custom_call.1} parent=1 // pred_check
      %p42 = pneg %p41
    $region19: #{tpu_custom_call.1} parent=1 // pred_check_branch
      %44 = sbr.rel (%p42) target = $region21
    $region20: #{tpu_custom_call.1} parent=1 // pred_region
      %45 = vst [vmem:[#allocation2] sm:$0x1] 0.0
      %46 = vst [vmem:[#allocation3] sm:$0x1] 0.0
      %vm47 = vcmask 0
      %48 = vst.msk [vmem:[#allocation4] sm:$0x1] %vm47, 0.0
    $region21: #{tpu_custom_call.1} parent=1 // pred_fallthru
      _
    %v49 = vld [vmem:[#allocation5] sm:$0x3]
    %v50 = vld [vmem:[#allocation5 + $0x2] sm:$0x3]
    %v51 = vld [vmem:[#allocation5 + $0x4] sm:$0x3]
    %v52 = vld [vmem:[#allocation5 + $0x6] sm:$0x3]
    %v53 = vld [vmem:[#allocation5 + $0x8] sm:$0x3]
    %v54 = vld [vmem:[#allocation5 + $0xa] sm:$0x3]
    %v55 = vld [vmem:[#allocation5 + $0xc] sm:$0x3]
    %v56 = vld [vmem:[#allocation5 + $0xe] sm:$0x3]
    %v57 = vld [vmem:[#allocation5 + $0x10] sm:$0x3]
    %v58 = vunpack.c.l.s8.bf16 %v49
    %v59 = vunpack.c.l.s8.bf16 %v50
    %v60 = vunpack.c.l.s8.bf16 %v51
    %v61 = vunpack.c.l.s8.bf16 %v52
    %v62 = vunpack.c.l.s8.bf16 %v53
    %v63 = vunpack.c.l.s8.bf16 %v54
    %v64 = vunpack.c.l.s8.bf16 %v55
    %v65 = vunpack.c.l.s8.bf16 %v56
    %v66 = vunpack.c.l.s8.bf16 %v57
    %v67 = vld [vmem:[#allocation8] sm:$0x3]
    %v68 = vld [vmem:[#allocation8 + $0x2] sm:$0x3]
    %v69 = vld [vmem:[#allocation8 + $0x4] sm:$0x3]
    %v70 = vld [vmem:[#allocation8 + $0x6] sm:$0x3]
    %v71 = vld [vmem:[#allocation8 + $0x8] sm:$0x3]
    %v72 = vld [vmem:[#allocation8 + $0xa] sm:$0x3]
    %v73 = vld [vmem:[#allocation8 + $0xc] sm:$0x3]
    %v74 = vld [vmem:[#allocation8 + $0xe] sm:$0x3]
    %v75 = vld [vmem:[#allocation8 + $0x10] sm:$0x3]
    %v76 = vunpack.c.l.s8.bf16 %v67
    %v77 = vunpack.c.l.s8.bf16 %v68
    %v78 = vunpack.c.l.s8.bf16 %v69
    %v79 = vunpack.c.l.s8.bf16 %v70
    %v80 = vunpack.c.l.s8.bf16 %v71
    %v81 = vunpack.c.l.s8.bf16 %v72
    %v82 = vunpack.c.l.s8.bf16 %v73
    %v83 = vunpack.c.l.s8.bf16 %v74
    %v84 = vunpack.c.l.s8.bf16 %v75
    %v85 = vmul.bf16 %v58, %v76
    %v86 = vmul.bf16 %v59, %v77
    %v87 = vmul.bf16 %v60, %v78
    %v88 = vmul.bf16 %v61, %v79
    %v89 = vmul.bf16 %v62, %v80
    %v90 = vmul.bf16 %v63, %v81
    %v91 = vmul.bf16 %v64, %v82
    %v92 = vmul.bf16 %v65, %v83
    %v93 = vmul.bf16 %v66, %v84
    %v94 = vadd.bf16 %v58, %v76
    %v95 = vadd.bf16 %v59, %v77
    %v96 = vadd.bf16 %v60, %v78
    %v97 = vadd.bf16 %v61, %v79
    %v98 = vadd.bf16 %v62, %v80
    %v99 = vadd.bf16 %v63, %v81
    %v100 = vadd.bf16 %v64, %v82
    %v101 = vadd.bf16 %v65, %v83
    %v102 = vadd.bf16 %v66, %v84
    %v103 = vld [vmem:[#allocation2] sm:$0x1]
    %v104 = vunpack.c.l.bf16 %v85
    %v105 = vunpack.c.l.bf16 %v86
    %v106 = vunpack.c.l.bf16 %v87
    %v107 = vunpack.c.l.bf16 %v88
    %v108 = vunpack.c.l.bf16 %v89
    %v109 = vunpack.c.l.bf16 %v90
    %v110 = vunpack.c.l.bf16 %v91
    %v111 = vunpack.c.l.bf16 %v92
    %v112 = vunpack.c.l.bf16 %v93
    %v113 = vadd.f32 %v104, %v105
    %v114 = vadd.f32 %v113, %v106
    %v115 = vadd.f32 %v114, %v107
    %v116 = vadd.f32 %v115, %v108
    %v117 = vadd.f32 %v116, %v109
    %v118 = vadd.f32 %v117, %v110
    %v119 = vadd.f32 %v118, %v111
    %v120 = vadd.f32 %v119, %v112
    %v121 = vrot.slane %v120, 4
    %v122 = vadd.f32 %v120, %v121
    %v123 = vrot.slane %v122, 2
    %v124 = vadd.f32 %v122, %v123
    %v125 = vrot.slane %v124, 1
    %v126 = vadd.f32 %v124, %v125
    %v127 = vadd.f32 %v103, %v126
    %128 = vst [vmem:[#allocation2] sm:$0x1] %v127
    %v129 = vld [vmem:[#allocation3] sm:$0x1]
    %v130 = vunpack.c.l.bf16 %v94
    %v131 = vunpack.c.l.bf16 %v95
    %v132 = vunpack.c.l.bf16 %v96
    %v133 = vunpack.c.l.bf16 %v97
    %v134 = vunpack.c.l.bf16 %v98
    %v135 = vunpack.c.l.bf16 %v99
    %v136 = vunpack.c.l.bf16 %v100
    %v137 = vunpack.c.l.bf16 %v101
    %v138 = vunpack.c.l.bf16 %v102
    %v139 = vadd.f32 %v130, %v131
    %v140 = vadd.f32 %v139, %v132
    %v141 = vadd.f32 %v140, %v133
    %v142 = vadd.f32 %v141, %v134
    %v143 = vadd.f32 %v142, %v135
    %v144 = vadd.f32 %v143, %v136
    %v145 = vadd.f32 %v144, %v137
    %v146 = vadd.f32 %v145, %v138
    %v147 = vrot.slane %v146, 4
    %v148 = vadd.f32 %v146, %v147
    %v149 = vrot.slane %v148, 2
    %v150 = vadd.f32 %v148, %v149
    %v151 = vrot.slane %v150, 1
    %v152 = vadd.f32 %v150, %v151
    %v153 = vadd.f32 %v129, %v152
    %154 = vst [vmem:[#allocation3] sm:$0x1] %v153
    %v155 = vlaneseq
    %v156 = vshrl.u32 %v155, 7
    %v157 = vadd.s32 %v156, 8
    %v158 = vadd.s32 %v156, 16
    %v159 = vadd.s32 %v156, 24
    %v160 = vadd.s32 %v156, 32
    %v161 = vadd.s32 %v156, 40
    %v162 = vadd.s32 %v156, 48
    %v163 = vadd.s32 %v156, 56
    %v164 = vadd.s32 %v156, 64
    %v165 = vadd.s32 %v156, 72
    %v166 = vadd.s32 %v156, 80
    %v167 = vadd.s32 %v156, 88
    %v168 = vadd.s32 %v156, 96
    %v169 = vadd.s32 %v156, 104
    %v170 = vadd.s32 %v156, 112
    %v171 = vadd.s32 %v156, 120
    %v172 = vlaneseq
    %v173 = vand.u32 %v172, 127
    %v174 = vmul.u32 %v173, 32
    %vm175 = vcmp.ge.s32.totalorder %v156, %v174
    %vm176 = vcmp.ge.s32.totalorder %v157, %v174
    %vm177 = vcmp.ge.s32.totalorder %v158, %v174
    %vm178 = vcmp.ge.s32.totalorder %v159, %v174
    %vm179 = vcmp.ge.s32.totalorder %v160, %v174
    %vm180 = vcmp.ge.s32.totalorder %v161, %v174
    %vm181 = vcmp.ge.s32.totalorder %v162, %v174
    %vm182 = vcmp.ge.s32.totalorder %v163, %v174
    %vm183 = vcmp.ge.s32.totalorder %v164, %v174
    %vm184 = vcmp.ge.s32.totalorder %v165, %v174
    %vm185 = vcmp.ge.s32.totalorder %v166, %v174
    %vm186 = vcmp.ge.s32.totalorder %v167, %v174
    %vm187 = vcmp.ge.s32.totalorder %v168, %v174
    %vm188 = vcmp.ge.s32.totalorder %v169, %v174
    %vm189 = vcmp.ge.s32.totalorder %v170, %v174
    %vm190 = vcmp.ge.s32.totalorder %v171, %v174
    %v191 = vadd.s32 %v173, 1
    %v192 = vmul.u32 %v191, 32
    %vm193 = vcmp.lt.s32.totalorder %v156, %v192
    %vm194 = vcmp.lt.s32.totalorder %v157, %v192
    %vm195 = vcmp.lt.s32.totalorder %v158, %v192
    %vm196 = vcmp.lt.s32.totalorder %v159, %v192
    %vm197 = vcmp.lt.s32.totalorder %v160, %v192
    %vm198 = vcmp.lt.s32.totalorder %v161, %v192
    %vm199 = vcmp.lt.s32.totalorder %v162, %v192
    %vm200 = vcmp.lt.s32.totalorder %v163, %v192
    %vm201 = vcmp.lt.s32.totalorder %v164, %v192
    %vm202 = vcmp.lt.s32.totalorder %v165, %v192
    %vm203 = vcmp.lt.s32.totalorder %v166, %v192
    %vm204 = vcmp.lt.s32.totalorder %v167, %v192
    %vm205 = vcmp.lt.s32.totalorder %v168, %v192
    %vm206 = vcmp.lt.s32.totalorder %v169, %v192
    %vm207 = vcmp.lt.s32.totalorder %v170, %v192
    %vm208 = vcmp.lt.s32.totalorder %v171, %v192
    %vm209 = vmand %vm175, %vm193
    %vm210 = vmand %vm176, %vm194
    %vm211 = vmand %vm177, %vm195
    %vm212 = vmand %vm178, %vm196
    %vm213 = vmand %vm179, %vm197
    %vm214 = vmand %vm180, %vm198
    %vm215 = vmand %vm181, %vm199
    %vm216 = vmand %vm182, %vm200
    %vm217 = vmand %vm183, %vm201
    %vm218 = vmand %vm184, %vm202
    %vm219 = vmand %vm185, %vm203
    %vm220 = vmand %vm186, %vm204
    %vm221 = vmand %vm187, %vm205
    %vm222 = vmand %vm188, %vm206
    %vm223 = vmand %vm189, %vm207
    %vm224 = vmand %vm190, %vm208
    %v225 = vsel %vm209, 1, 0
    %v226 = vsel %vm210, 1, 0
    %v227 = vsel %vm211, 1, 0
    %v228 = vsel %vm212, 1, 0
    %v229 = vsel %vm213, 1, 0
    %v230 = vsel %vm214, 1, 0
    %v231 = vsel %vm215, 1, 0
    %v232 = vsel %vm216, 1, 0
    %v233 = vsel %vm217, 1, 0
    %v234 = vsel %vm218, 1, 0
    %v235 = vsel %vm219, 1, 0
    %v236 = vsel %vm220, 1, 0
    %v237 = vsel %vm221, 1, 0
    %v238 = vsel %vm222, 1, 0
    %v239 = vsel %vm223, 1, 0
    %v240 = vsel %vm224, 1, 0
    %v241 = vcvt.s32.f32 %v225
    %v242 = vcvt.s32.f32 %v226
    %v243 = vcvt.s32.f32 %v227
    %v244 = vcvt.s32.f32 %v228
    %v245 = vcvt.s32.f32 %v229
    %v246 = vcvt.s32.f32 %v230
    %v247 = vcvt.s32.f32 %v231
    %v248 = vcvt.s32.f32 %v232
    %v249 = vcvt.s32.f32 %v233
    %v250 = vcvt.s32.f32 %v234
    %v251 = vcvt.s32.f32 %v235
    %v252 = vcvt.s32.f32 %v236
    %v253 = vcvt.s32.f32 %v237
    %v254 = vcvt.s32.f32 %v238
    %v255 = vcvt.s32.f32 %v239
    %v256 = vcvt.s32.f32 %v240
    %v257 = vpack.c.bf16 %v242, %v241
    %v258 = vpack.c.bf16 %v244, %v243
    %v259 = vpack.c.bf16 %v246, %v245
    %v260 = vpack.c.bf16 %v248, %v247
    %v261 = vpack.c.bf16 %v250, %v249
    %v262 = vpack.c.bf16 %v252, %v251
    %v263 = vpack.c.bf16 %v254, %v253
    %v264 = vpack.c.bf16 %v256, %v255
    %v274 = vunpack.c.l.b16 %v85
    %v275 = vunpack.c.l.b16 %v86
    %v276 = vunpack.c.l.b16 %v87
    %v277 = vunpack.c.l.b16 %v88
    %v278 = vunpack.c.l.b16 %v89
    %v279 = vunpack.c.l.b16 %v90
    %v280 = vunpack.c.l.b16 %v91
    %v281 = vunpack.c.l.b16 %v92
    %v282 = vunpack.c.l.b16 %v93
    %v283 = vpack.c.b16 %v275, %v274
    %v284 = vpack.c.b16 %v277, %v276
    %v285 = vpack.c.b16 %v279, %v278
    %v286 = vpack.c.b16 %v281, %v280
    %v287 = vpack.c.b16 %v282, %v282
    %293 = vmatprep.subr.bf16.mxu0 0
    %294 = vmatpush1.bf16.msra.mxu0 %v264
    %295 = vmatprep.subr.bf16.mxu0 0
    %296 = vmatpush1.bf16.msra.mxu0 %v263
    %297 = vmatprep.subr.bf16.mxu0 0
    %298 = vmatpush1.bf16.msra.mxu0 %v262
    %299 = vmatprep.subr.bf16.mxu0 0
    %300 = vmatpush1.bf16.msra.mxu0 %v261
    %301 = vmatprep.subr.bf16.mxu0 0
    %302 = vmatpush1.bf16.msra.mxu0 %v260
    %303 = vmatprep.subr.bf16.mxu0 0
    %304 = vmatpush1.bf16.msra.mxu0 %v259
    %305 = vmatprep.subr.bf16.mxu0 0
    %306 = vmatpush1.bf16.msra.mxu0 %v258
    %307 = vmatprep.subr.bf16.mxu0 0
    %308 = vmatpush1.bf16.msra.mxu0 %v257
    %309 = vmatprep.subr.bf16.mxu0 0
    %310 = vmatpush2.bf16.msra.mxu0 0
    %311 = vmatprep.subr.bf16.mxu0 0
    %312 = vmatpush2.bf16.msra.mxu0 0
    %313 = vmatprep.subr.bf16.mxu0 0
    %314 = vmatpush2.bf16.msra.mxu0 0
    %315 = vmatprep.subr.bf16.mxu0 0
    %316 = vmatpush2.bf16.msra.mxu0 0
    %317 = vmatprep.subr.bf16.mxu0 0
    %318 = vmatpush2.bf16.msra.mxu0 0
    %319 = vmatprep.subr.bf16.mxu0 0
    %320 = vmatpush2.bf16.msra.mxu0 0
    %321 = vmatprep.subr.bf16.mxu0 0
    %322 = vmatpush2.bf16.msra.mxu0 0
    %323 = vmatprep.subr.bf16.mxu0 0
    %324 = vmatpush2.bf16.msra.mxu0 0
    %325 = vmatprep.mubr.bf16.mxu0 0
    %326 = vmatmul.mubr.bf16.gmra.mxu0 %v283
    %v327 = vpop.f32.mrf.mxu0
    %v328 = vadd.f32 0.0, %v327
    %v329 = vpop.f32.mrf.mxu0
    %v330 = vpop.f32.mrf.mxu0
    %v331 = vadd.f32 0.0, %v330
    %v332 = vpop.f32.mrf.mxu0
    %333 = vmatprep.mubr.bf16.mxu0 0
    %334 = vmatmul.mubr.bf16.gmra.mxu0 %v284
    %v335 = vpop.f32.mrf.mxu0
    %v336 = vadd.f32 0.0, %v335
    %v337 = vpop.f32.mrf.mxu0
    %v338 = vpop.f32.mrf.mxu0
    %v339 = vadd.f32 0.0, %v338
    %v340 = vpop.f32.mrf.mxu0
    %341 = vmatprep.mubr.bf16.mxu0 0
    %342 = vmatmul.mubr.bf16.gmra.mxu0 %v285
    %v343 = vpop.f32.mrf.mxu0
    %v344 = vadd.f32 0.0, %v343
    %v345 = vpop.f32.mrf.mxu0
    %v346 = vpop.f32.mrf.mxu0
    %v347 = vadd.f32 0.0, %v346
    %v348 = vpop.f32.mrf.mxu0
    %349 = vmatprep.mubr.bf16.mxu0 0
    %350 = vmatmul.mubr.bf16.gmra.mxu0 %v286
    %v351 = vpop.f32.mrf.mxu0
    %v352 = vadd.f32 0.0, %v351
    %v353 = vpop.f32.mrf.mxu0
    %v354 = vpop.f32.mrf.mxu0
    %v355 = vadd.f32 0.0, %v354
    %v356 = vpop.f32.mrf.mxu0
    %357 = vmatprep.mubr.bf16.mxu0 0
    %358 = vmatmul.mubr.bf16.gmra.mxu0 %v287
    %v359 = vpop.f32.mrf.mxu0
    %v360 = vadd.f32 0.0, %v359
    %v361 = vpop.f32.mrf.mxu0
    %v362 = vpop.f32.mrf.mxu0
    %v363 = vpop.f32.mrf.mxu0
    %364 = vdwg.mxu0
    %v374 = vunpack.c.l.b16 %v94
    %v375 = vunpack.c.l.b16 %v95
    %v376 = vunpack.c.l.b16 %v96
    %v377 = vunpack.c.l.b16 %v97
    %v378 = vunpack.c.l.b16 %v98
    %v379 = vunpack.c.l.b16 %v99
    %v380 = vunpack.c.l.b16 %v100
    %v381 = vunpack.c.l.b16 %v101
    %v382 = vunpack.c.l.b16 %v102
    %v383 = vpack.c.b16 %v375, %v374
    %v384 = vpack.c.b16 %v377, %v376
    %v385 = vpack.c.b16 %v379, %v378
    %v386 = vpack.c.b16 %v381, %v380
    %v387 = vpack.c.b16 %v382, %v382
    %393 = vmatprep.subr.bf16.mxu0 0
    %394 = vmatpush1.bf16.msra.mxu0 %v264
    %395 = vmatprep.subr.bf16.mxu0 0
    %396 = vmatpush1.bf16.msra.mxu0 %v263
    %397 = vmatprep.subr.bf16.mxu0 0
    %398 = vmatpush1.bf16.msra.mxu0 %v262
    %399 = vmatprep.subr.bf16.mxu0 0
    %400 = vmatpush1.bf16.msra.mxu0 %v261
    %401 = vmatprep.subr.bf16.mxu0 0
    %402 = vmatpush1.bf16.msra.mxu0 %v260
    %403 = vmatprep.subr.bf16.mxu0 0
    %404 = vmatpush1.bf16.msra.mxu0 %v259
    %405 = vmatprep.subr.bf16.mxu0 0
    %406 = vmatpush1.bf16.msra.mxu0 %v258
    %407 = vmatprep.subr.bf16.mxu0 0
    %408 = vmatpush1.bf16.msra.mxu0 %v257
    %409 = vmatprep.subr.bf16.mxu0 0
    %410 = vmatpush2.bf16.msra.mxu0 0
    %411 = vmatprep.subr.bf16.mxu0 0
    %412 = vmatpush2.bf16.msra.mxu0 0
    %413 = vmatprep.subr.bf16.mxu0 0
    %414 = vmatpush2.bf16.msra.mxu0 0
    %415 = vmatprep.subr.bf16.mxu0 0
    %416 = vmatpush2.bf16.msra.mxu0 0
    %417 = vmatprep.subr.bf16.mxu0 0
    %418 = vmatpush2.bf16.msra.mxu0 0
    %419 = vmatprep.subr.bf16.mxu0 0
    %420 = vmatpush2.bf16.msra.mxu0 0
    %421 = vmatprep.subr.bf16.mxu0 0
    %422 = vmatpush2.bf16.msra.mxu0 0
    %423 = vmatprep.subr.bf16.mxu0 0
    %424 = vmatpush2.bf16.msra.mxu0 0
    %425 = vmatprep.mubr.bf16.mxu0 0
    %426 = vmatmul.mubr.bf16.gmra.mxu0 %v383
    %v427 = vpop.f32.mrf.mxu0
    %v428 = vadd.f32 0.0, %v427
    %v429 = vpop.f32.mrf.mxu0
    %v430 = vpop.f32.mrf.mxu0
    %v431 = vadd.f32 0.0, %v430
    %v432 = vpop.f32.mrf.mxu0
    %433 = vmatprep.mubr.bf16.mxu0 0
    %434 = vmatmul.mubr.bf16.gmra.mxu0 %v384
    %v435 = vpop.f32.mrf.mxu0
    %v436 = vadd.f32 0.0, %v435
    %v437 = vpop.f32.mrf.mxu0
    %v438 = vpop.f32.mrf.mxu0
    %v439 = vadd.f32 0.0, %v438
    %v440 = vpop.f32.mrf.mxu0
    %441 = vmatprep.mubr.bf16.mxu0 0
    %442 = vmatmul.mubr.bf16.gmra.mxu0 %v385
    %v443 = vpop.f32.mrf.mxu0
    %v444 = vadd.f32 0.0, %v443
    %v445 = vpop.f32.mrf.mxu0
    %v446 = vpop.f32.mrf.mxu0
    %v447 = vadd.f32 0.0, %v446
    %v448 = vpop.f32.mrf.mxu0
    %449 = vmatprep.mubr.bf16.mxu0 0
    %450 = vmatmul.mubr.bf16.gmra.mxu0 %v386
    %v451 = vpop.f32.mrf.mxu0
    %v452 = vadd.f32 0.0, %v451
    %v453 = vpop.f32.mrf.mxu0
    %v454 = vpop.f32.mrf.mxu0
    %v455 = vadd.f32 0.0, %v454
    %v456 = vpop.f32.mrf.mxu0
    %457 = vmatprep.mubr.bf16.mxu0 0
    %458 = vmatmul.mubr.bf16.gmra.mxu0 %v387
    %v459 = vpop.f32.mrf.mxu0
    %v460 = vadd.f32 0.0, %v459
    %v461 = vpop.f32.mrf.mxu0
    %v462 = vpop.f32.mrf.mxu0
    %v463 = vpop.f32.mrf.mxu0
    %464 = vdwg.mxu0
    %vm465 = vcmp.gt.f32.partialorder %v428, 0.0
    %vm466 = vcmp.gt.f32.partialorder %v431, 0.0
    %vm467 = vcmp.gt.f32.partialorder %v436, 0.0
    %vm468 = vcmp.gt.f32.partialorder %v439, 0.0
    %vm469 = vcmp.gt.f32.partialorder %v444, 0.0
    %vm470 = vcmp.gt.f32.partialorder %v447, 0.0
    %vm471 = vcmp.gt.f32.partialorder %v452, 0.0
    %vm472 = vcmp.gt.f32.partialorder %v455, 0.0
    %vm473 = vcmp.gt.f32.partialorder %v460, 0.0
    %v474 = vmul.f32 %v328, 2.0
    %v475 = vmul.f32 %v331, 2.0
    %v476 = vmul.f32 %v336, 2.0
    %v477 = vmul.f32 %v339, 2.0
    %v478 = vmul.f32 %v344, 2.0
    %v479 = vmul.f32 %v347, 2.0
    %v480 = vmul.f32 %v352, 2.0
    %v481 = vmul.f32 %v355, 2.0
    %v482 = vmul.f32 %v360, 2.0
    %v483 = vsel %vm465, %v428, 1.0
    %v484 = vsel %vm466, %v431, 1.0
    %v485 = vsel %vm467, %v436, 1.0
    %v486 = vsel %vm468, %v439, 1.0
    %v487 = vsel %vm469, %v444, 1.0
    %v488 = vsel %vm470, %v447, 1.0
    %v489 = vsel %vm471, %v452, 1.0
    %v490 = vsel %vm472, %v455, 1.0
    %v491 = vsel %vm473, %v460, 1.0
    %v492 = vrcp.pop %v483
    %v493 = vmul.f32 %v474, %v492
    %v494 = vrcp.pop %v484
    %v495 = vmul.f32 %v475, %v494
    %v496 = vrcp.pop %v485
    %v497 = vmul.f32 %v476, %v496
    %v498 = vrcp.pop %v486
    %v499 = vmul.f32 %v477, %v498
    %v500 = vrcp.pop %v487
    %v501 = vmul.f32 %v478, %v500
    %v502 = vrcp.pop %v488
    %v503 = vmul.f32 %v479, %v502
    %v504 = vrcp.pop %v489
    %v505 = vmul.f32 %v480, %v504
    %v506 = vrcp.pop %v490
    %v507 = vmul.f32 %v481, %v506
    %v508 = vrcp.pop %v491
    %v509 = vmul.f32 %v482, %v508
    %v510 = vsel %vm465, %v493, 0.0
    %v511 = vsel %vm466, %v495, 0.0
    %v512 = vsel %vm467, %v497, 0.0
    %v513 = vsel %vm468, %v499, 0.0
    %v514 = vsel %vm469, %v501, 0.0
    %v515 = vsel %vm470, %v503, 0.0
    %v516 = vsel %vm471, %v505, 0.0
    %v517 = vsel %vm472, %v507, 0.0
    %v518 = vsel %vm473, %v509, 0.0
    %v519 = vld [vmem:[#allocation4] sm:$0x1]
    %vm520 = vcmask 31744
    %v521 = vsel %vm520, %v510, 0.0
    %522 = vadd.xlane.f32.xlu0 %v521
    %v523 = vpop.xlane.xlu0 %522
    %v524 = vsel %vm520, %v511, 0.0
    %525 = vadd.xlane.f32.xlu0 %v524
    %v526 = vpop.xlane.xlu0 %525
    %v527 = vsel %vm520, %v512, 0.0
    %528 = vadd.xlane.f32.xlu0 %v527
    %v529 = vpop.xlane.xlu0 %528
    %v530 = vsel %vm520, %v513, 0.0
    %531 = vadd.xlane.f32.xlu0 %v530
    %v532 = vpop.xlane.xlu0 %531
    %v533 = vsel %vm520, %v514, 0.0
    %534 = vadd.xlane.f32.xlu0 %v533
    %v535 = vpop.xlane.xlu0 %534
    %v536 = vsel %vm520, %v515, 0.0
    %537 = vadd.xlane.f32.xlu0 %v536
    %v538 = vpop.xlane.xlu0 %537
    %v539 = vsel %vm520, %v516, 0.0
    %540 = vadd.xlane.f32.xlu0 %v539
    %v541 = vpop.xlane.xlu0 %540
    %v542 = vsel %vm520, %v517, 0.0
    %543 = vadd.xlane.f32.xlu0 %v542
    %v544 = vpop.xlane.xlu0 %543
    %v545 = vsel %vm520, %v518, 0.0
    %546 = vadd.xlane.f32.xlu0 %v545
    %v547 = vpop.xlane.xlu0 %546
    %v548 = vadd.f32 %v523, %v526
    %v549 = vadd.f32 %v548, %v529
    %v550 = vadd.f32 %v549, %v532
    %v551 = vadd.f32 %v550, %v535
    %v552 = vadd.f32 %v551, %v538
    %v553 = vadd.f32 %v552, %v541
    %v554 = vadd.f32 %v553, %v544
    %v555 = vadd.f32 %v554, %v547
    %v556 = vrot.slane %v555, 4
    %v557 = vadd.f32 %v555, %v556
    %v558 = vrot.slane %v557, 2
    %v559 = vadd.f32 %v557, %v558
    %v560 = vrot.slane %v559, 1
    %v561 = vadd.f32 %v559, %v560
    %v562 = vadd.f32 %v519, %v561
    %vm563 = vcmask 0
    %564 = vst.msk [vmem:[#allocation4] sm:$0x1] %vm563, %v562
    // Predicated region
    $region22: #{tpu_custom_call.1} parent=1 // pred_check
      %p565 = pneg %p41
    $region23: #{tpu_custom_call.1} parent=1 // pred_check_branch
      %567 = sbr.rel (%p565) target = $region25
    $region24: #{tpu_custom_call.1} parent=1 // pred_region
      %v568 = vld [vmem:[#allocation2] sm:$0x1]
      %v569 = vld [vmem:[#allocation3] sm:$0x1]
      %570 = vrot.lane.b32.xlu0 %v568, 32
      %v571 = vpop.permute.xlu0 %570
      %v572 = vadd.f32 %v568, %v571
      %573 = vrot.lane.b32.xlu0 %v569, 32
      %v574 = vpop.permute.xlu0 %573
      %v575 = vadd.f32 %v569, %v574
      %576 = vrot.lane.b32.xlu0 %v568, 64
      %v577 = vpop.permute.xlu0 %576
      %v578 = vadd.f32 %v572, %v577
      %579 = vrot.lane.b32.xlu0 %v569, 64
      %v580 = vpop.permute.xlu0 %579
      %v581 = vadd.f32 %v575, %v580
      %582 = vrot.lane.b32.xlu0 %v568, 96
      %v583 = vpop.permute.xlu0 %582
      %v584 = vadd.f32 %v578, %v583
      %585 = vrot.lane.b32.xlu0 %v569, 96
      %v586 = vpop.permute.xlu0 %585
      %v587 = vadd.f32 %v581, %v586
      %vm588 = vcmp.gt.f32.partialorder %v587, 0.0
      %v589 = vmul.f32 %v584, 2.0
      %v590 = vsel %vm588, %v587, 1.0
      %v591 = vrcp.pop %v590
      %v592 = vmul.f32 %v589, %v591
      %v593 = vsel %vm588, %v592, 0.0
      %vm594 = vcmp.lt.s32.totalorder %v173, 32
      %v595 = vsel %vm594, %v593, 0.0
      %vm596 = vcmask 1040384
      %v597 = vsel %vm596, %v595, 0.0
      %598 = vadd.xlane.f32.xlu0 %v597
      %v599 = vpop.xlane.xlu0 %598
      %v600 = vmul.f32 %v599, 0.03125
      %v601 = vsel %vm596, %v568, 0.0
      %602 = vadd.xlane.f32.xlu0 %v601
      %v603 = vpop.xlane.xlu0 %602
      %v604 = vsel %vm596, %v569, 0.0
      %605 = vadd.xlane.f32.xlu0 %v604
      %v606 = vpop.xlane.xlu0 %605
      %vm607 = vcmp.gt.f32.partialorder %v606, 0.0
      %v608 = vmul.f32 %v603, 2.0
      %v609 = vsel %vm607, %v606, 1.0
      %v610 = vrcp.pop %v609
      %v611 = vmul.f32 %v608, %v610
      %v612 = vsel %vm607, %v611, 0.0
      %v613 = vld [vmem:[#allocation4] sm:$0x1]
      %v614 = vmul.f32 %v613, 0.0034722222
      %vm615 = vcmp.eq.s32.totalorder %v173, 0
      %vm616 = vcmp.eq.s32.totalorder %v173, 1
      %vm617 = vcmp.eq.s32.totalorder %v173, 2
      %619 = vset.pattern.permute.xlu0 0
      %620 = vperm.xlu0 %619, %v614
      %v621 = vpop.permute.xlu0 %620
      %v623 = vlaneseq
      %v624 = vshrl.u32 %v623, 7
      %v625 = vsub.s32 0, %v624
      %v626 = vrot.slane %v621, %v625
      %v627 = vsel %vm617, %v626, 0.0
      %v628 = vsel %vm616, %v612, %v627
      %v629 = vsel %vm615, %v600, %v628
      %630 = vst [vmem:[#allocation10] sm:$0x1] %v629
    $region25: #{tpu_custom_call.1} parent=1 // pred_fallthru
      _
    // Predicated region
    $region26: #{tpu_custom_call.1} parent=1 // pred_check
      _
    $region27: #{tpu_custom_call.1} parent=1 // pred_check_branch
      %632 = sbr.rel (0) target = $region29
    $region28: #{tpu_custom_call.1} parent=1 // pred_region
      %s634 = ssub.s32 16, 16
      %635 = vsyncadd [#allocation7], %s634
      %s637 = sshll.u32 [#allocation10], 4
      %s638 = int_to_ptr.vmem [resolvable:$true] %s637
      %640 = dma.vmem_to_hbm [thread:$0]  %s638, 16, %s2, [#allocation7]
    $region29: #{tpu_custom_call.1} parent=1 // pred_fallthru
      _
    // Predicated region
    $region30: #{tpu_custom_call.1} parent=1 // pred_check
      _
    $region31: #{tpu_custom_call.1} parent=1 // pred_check_branch
      %642 = sbr.rel (0) target = $region33
    $region32: #{tpu_custom_call.1} parent=1 // pred_region
      %643 = dma.done [#allocation7], 16
    $region33: #{tpu_custom_call.1} parent=1 // pred_fallthru
      _
    %644 = vsyncpa [#allocation6], 1
    %645 = vsyncpa [#allocation9], 1
    %646 = vsyncpa [#allocation7], 1

</llo_original>
